<compile_context>
chip_gen: v6e
topology: v6e:2x2x1
jax: 0.10.0
libtpu: 0.0.40
codegen_flags: <defaults>
</compile_context>

<pallas_src>
import jax
import jax.numpy as jnp
from jax.experimental import pallas as pl
from jax.experimental.pallas import tpu as pltpu

INPUT_DIM = 29
EMBEDDING_DIM = 128
OUTPUT_DIM = 50
MID_DIM = 256

K_PAD = 32            # padded input feature dim (29 -> 32)
N_PACK = 256          # packed lane-dense output width: [emb(128) | out(50) | zeros(78)]
DEFAULT_TB = 2048     # batch tile: multiple of 8 (f32 sublanes) and of 256 (MXU rows)


def mlp_regressor_kernel(x_ref, w1_ref, b1_ref, wc_ref, bc_ref, pack_ref):
    # Layer 1: Linear(32, 256) + ReLU, f32 accumulation on the MXU.
    h = jnp.dot(x_ref[...], w1_ref[...], preferred_element_type=jnp.float32) + b1_ref[...]
    h = jnp.maximum(h, 0.0)
    # Fused layers 2+3: one lane-dense [256 x 256] MXU pass.
    #   cols   0:128 -> emb = h @ w2 + b2
    #   cols 128:178 -> out = h @ (w2 @ w3) + (b2 @ w3 + b3)
    pack = jnp.dot(h, wc_ref[...], preferred_element_type=jnp.float32) + bc_ref[...]
    pack_ref[...] = pack.astype(pack_ref.dtype)


def mlp_regressor(x, params, tb=DEFAULT_TB):
    """x: [B, INPUT_DIM] float32.  Returns (emb [B, 128], out [B, 50])."""
    w1, b1, w2, b2, w3, b3 = params
    B = x.shape[0]

    # Pad input features 29 -> 32 with zeros (numerically identical).
    x_p = jnp.pad(x, ((0, 0), (0, K_PAD - INPUT_DIM)))
    w1_p = jnp.pad(w1, ((0, K_PAD - INPUT_DIM), (0, 0)))

    # Fold the final layer into the middle matmul and pack a lane-dense RHS.
    w23 = w2 @ w3              # [256, 50]
    b23 = b2 @ w3 + b3         # [1, 50]
    wc = jnp.zeros((MID_DIM, N_PACK), jnp.float32)
    wc = wc.at[:, :EMBEDDING_DIM].set(w2)
    wc = wc.at[:, EMBEDDING_DIM:EMBEDDING_DIM + OUTPUT_DIM].set(w23)
    bc = jnp.zeros((1, N_PACK), jnp.float32)
    bc = bc.at[:, :EMBEDDING_DIM].set(b2)
    bc = bc.at[:, EMBEDDING_DIM:EMBEDDING_DIM + OUTPUT_DIM].set(b23)

    # Batch tile: multiple of 8; small batches collapse to a single block.
    TB = min(tb, max(8, ((B + 7) // 8) * 8))
    grid = (pl.cdiv(B, TB),)

    cost = pl.CostEstimate(
        flops=2 * B * (K_PAD * MID_DIM + MID_DIM * N_PACK),
        transcendentals=0,
        bytes_accessed=4 * (B * (K_PAD + N_PACK)
                            + w1_p.size + b1.size + wc.size + bc.size),
    )

    packed = pl.pallas_call(
        mlp_regressor_kernel,
        out_shape=jax.ShapeDtypeStruct((B, N_PACK), jnp.float32),
        grid=grid,
        in_specs=[
            pl.BlockSpec((TB, K_PAD), lambda i: (i, 0)),        # streamed activations
            pl.BlockSpec((K_PAD, MID_DIM), lambda i: (0, 0)),   # VMEM-resident weights
            pl.BlockSpec((1, MID_DIM), lambda i: (0, 0)),
            pl.BlockSpec((MID_DIM, N_PACK), lambda i: (0, 0)),
            pl.BlockSpec((1, N_PACK), lambda i: (0, 0)),
        ],
        out_specs=pl.BlockSpec((TB, N_PACK), lambda i: (i, 0)),
        compiler_params=pltpu.CompilerParams(
            dimension_semantics=("parallel",),
        ),
        cost_estimate=cost,
    )(x_p, w1_p, b1, wc, bc)

    emb = packed[:, :EMBEDDING_DIM]
    out = packed[:, EMBEDDING_DIM:EMBEDDING_DIM + OUTPUT_DIM]
    return emb, out


def init_params(key):
    """Deterministic init mimicking PyTorch's default Linear init:
    U(-1/sqrt(fan_in), 1/sqrt(fan_in)) for both weights and biases."""
    ks = jax.random.split(key, 6)

    def linear(kw, kb, fan_in, fan_out):
        bound = 1.0 / jnp.sqrt(jnp.float32(fan_in))
        w = jax.random.uniform(kw, (fan_in, fan_out), jnp.float32, -bound, bound)
        b = jax.random.uniform(kb, (1, fan_out), jnp.float32, -bound, bound)
        return w, b

    w1, b1 = linear(ks[0], ks[1], INPUT_DIM, MID_DIM)
    w2, b2 = linear(ks[2], ks[3], MID_DIM, EMBEDDING_DIM)
    w3, b3 = linear(ks[4], ks[5], EMBEDDING_DIM, OUTPUT_DIM)
    return (w1, b1, w2, b2, w3, b3)


def reference(x, params):
    w1, b1, w2, b2, w3, b3 = params
    h = jnp.maximum(x @ w1 + b1, 0.0)
    emb = h @ w2 + b2
    out = emb @ w3 + b3
    return emb, out


if __name__ == "__main__":
    key = jax.random.PRNGKey(0)
    kx, kp = jax.random.split(key)
    params = init_params(kp)

    # Case 1: tiny batch, single block.
    B = 8
    x = jax.random.normal(kx, (B, INPUT_DIM), jnp.float32)
    emb, out = mlp_regressor(x, params)
    emb, out = jax.block_until_ready(emb), jax.block_until_ready(out)
    emb_ref, out_ref = reference(x, params)
    assert emb.shape == (B, EMBEDDING_DIM) and out.shape == (B, OUTPUT_DIM)
    # W23 folding reassociates f32 accumulation -> allow small drift vs reference.
    assert jnp.allclose(emb, emb_ref, atol=1e-4, rtol=1e-4)
    assert jnp.allclose(out, out_ref, atol=1e-4, rtol=1e-4)

    # Case 2: multi-tile grid with a ragged last block (exercises the pipelined path).
    B2 = 200
    x2 = jax.random.normal(jax.random.PRNGKey(1), (B2, INPUT_DIM), jnp.float32)
    emb2, out2 = mlp_regressor(x2, params, tb=64)
    emb2, out2 = jax.block_until_ready(emb2), jax.block_until_ready(out2)
    emb2_ref, out2_ref = reference(x2, params)
    assert emb2.shape == (B2, EMBEDDING_DIM) and out2.shape == (B2, OUTPUT_DIM)
    assert jnp.allclose(emb2, emb2_ref, atol=1e-4, rtol=1e-4)
    assert jnp.allclose(out2, out2_ref, atol=1e-4, rtol=1e-4)

    print("KERNEL_OK")
</pallas_src>

<mosaic_0001>
module attributes {stable_mosaic.version = 11 : i64} {
  func.func @mlp_regressor_kernel(%arg0: i32, %arg1: memref<8x32xf32, #tpu.memory_space<vmem>>, %arg2: memref<32x256xf32, #tpu.memory_space<vmem>>, %arg3: memref<1x256xf32, #tpu.memory_space<vmem>>, %arg4: memref<256x256xf32, #tpu.memory_space<vmem>>, %arg5: memref<1x256xf32, #tpu.memory_space<vmem>>, %arg6: memref<8x256xf32, #tpu.memory_space<vmem>>) attributes {dimension_semantics = [#tpu.dimension_semantics<parallel>], iteration_bounds = array<i64: 1>, scalar_prefetch = 0 : i64, scratch_operands = 0 : i64, tpu.core_type = #tpu.core_type<tc>, window_params = [{transform_indices = @transform_0, window_bounds = array<i64: 8, 32>}, {pipeline_mode = #tpu.pipeline_mode<synchronous>, transform_indices = @transform_1, window_bounds = array<i64: 32, 256>}, {pipeline_mode = #tpu.pipeline_mode<synchronous>, transform_indices = @transform_2, window_bounds = array<i64: 1, 256>}, {pipeline_mode = #tpu.pipeline_mode<synchronous>, transform_indices = @transform_3, window_bounds = array<i64: 256, 256>}, {pipeline_mode = #tpu.pipeline_mode<synchronous>, transform_indices = @transform_4, window_bounds = array<i64: 1, 256>}, {transform_indices = @transform_5, window_bounds = array<i64: 8, 256>}]} {
    %c0 = arith.constant 0 : index
    %c0_0 = arith.constant 0 : index
    %0 = vector.load %arg1[%c0, %c0_0] : memref<8x32xf32, #tpu.memory_space<vmem>>, vector<8x32xf32>
    %c0_1 = arith.constant 0 : index
    %c0_2 = arith.constant 0 : index
    %1 = vector.load %arg2[%c0_1, %c0_2] : memref<32x256xf32, #tpu.memory_space<vmem>>, vector<32x256xf32>
    %cst = arith.constant dense<0.000000e+00> : vector<8x256xf32>
    %2 = tpu.matmul %0, %1, %cst {dimension_numbers = #tpu.dot_dimension_numbers<[1], [0], [0], [1], [0, 0, 1, 1], [], []>} : vector<8x32xf32>, vector<32x256xf32>, vector<8x256xf32> -> vector<8x256xf32>
    %c0_3 = arith.constant 0 : index
    %c0_4 = arith.constant 0 : index
    %3 = vector.load %arg3[%c0_3, %c0_4] : memref<1x256xf32, #tpu.memory_space<vmem>>, vector<1x256xf32>
    %4 = vector.broadcast %3 : vector<1x256xf32> to vector<8x256xf32>
    %5 = arith.addf %2, %4 : vector<8x256xf32>
    %cst_5 = arith.constant 0.000000e+00 : f32
    %6 = vector.broadcast %cst_5 : f32 to vector<8x256xf32>
    %7 = arith.maximumf %5, %6 : vector<8x256xf32>
    %c0_6 = arith.constant 0 : index
    %c0_7 = arith.constant 0 : index
    %8 = vector.load %arg4[%c0_6, %c0_7] : memref<256x256xf32, #tpu.memory_space<vmem>>, vector<256x256xf32>
    %cst_8 = arith.constant dense<0.000000e+00> : vector<8x256xf32>
    %9 = tpu.matmul %7, %8, %cst_8 {dimension_numbers = #tpu.dot_dimension_numbers<[1], [0], [0], [1], [0, 0, 1, 1], [], []>} : vector<8x256xf32>, vector<256x256xf32>, vector<8x256xf32> -> vector<8x256xf32>
    %c0_9 = arith.constant 0 : index
    %c0_10 = arith.constant 0 : index
    %10 = vector.load %arg5[%c0_9, %c0_10] : memref<1x256xf32, #tpu.memory_space<vmem>>, vector<1x256xf32>
    %11 = vector.broadcast %10 : vector<1x256xf32> to vector<8x256xf32>
    %12 = arith.addf %9, %11 : vector<8x256xf32>
    %c0_11 = arith.constant 0 : index
    %c0_12 = arith.constant 0 : index
    %13 = vector.load %arg6[%c0_11, %c0_12] : memref<8x256xf32, #tpu.memory_space<vmem>>, vector<8x256xf32>
    tpu.vector_store %arg6[%c0_11, %c0_12], %12 {strides = array<i32>} : memref<8x256xf32, #tpu.memory_space<vmem>>, vector<8x256xf32>,
    return
  }
  func.func @transform_0(%arg0: i32) -> (i32, i32) {
    %c0_i32 = arith.constant 0 : i32
    %c0_i32_0 = arith.constant 0 : i32
    return %arg0, %c0_i32 : i32, i32
  }
  func.func @transform_1(%arg0: i32) -> (i32, i32) {
    %c0_i32 = arith.constant 0 : i32
    %c0_i32_0 = arith.constant 0 : i32
    %c0_i32_1 = arith.constant 0 : i32
    return %c0_i32, %c0_i32_0 : i32, i32
  }
  func.func @transform_2(%arg0: i32) -> (i32, i32) {
    %c0_i32 = arith.constant 0 : i32
    %c0_i32_0 = arith.constant 0 : i32
    %c0_i32_1 = arith.constant 0 : i32
    return %c0_i32, %c0_i32_0 : i32, i32
  }
  func.func @transform_3(%arg0: i32) -> (i32, i32) {
    %c0_i32 = arith.constant 0 : i32
    %c0_i32_0 = arith.constant 0 : i32
    %c0_i32_1 = arith.constant 0 : i32
    return %c0_i32, %c0_i32_0 : i32, i32
  }
  func.func @transform_4(%arg0: i32) -> (i32, i32) {
    %c0_i32 = arith.constant 0 : i32
    %c0_i32_0 = arith.constant 0 : i32
    %c0_i32_1 = arith.constant 0 : i32
    return %c0_i32, %c0_i32_0 : i32, i32
  }
  func.func @transform_5(%arg0: i32) -> (i32, i32) {
    %c0_i32 = arith.constant 0 : i32
    %c0_i32_0 = arith.constant 0 : i32
    return %arg0, %c0_i32 : i32, i32
  }
}

</mosaic_0001>

<llo_original>
// kernel: tpu_custom_call.1
$region0: #{tpu_custom_call.1}
  #allocation0 [shape = 'u32[]', space=smem, size = 0x4, offset = 0x4, fixed_abs, tag = 'smem constant byte address 0x4 - core index']
  #allocation1 [shape = 'u32[144,128]{1,0:T(1,128)}', space=vmem, size = 0x12000, scoped, tag = 'internal scratch']
  %s0 = inlined_call_operand.hbm [shape: f32[8,32], index: 0, kind: input, shape index: {}]
  %s1 = inlined_call_operand.hbm [shape: f32[32,256], index: 1, kind: input, shape index: {}]
  %s2 = inlined_call_operand.vmem [shape: f32[1,256], index: 2, kind: input, shape index: {}]
  %s3 = inlined_call_operand.hbm [shape: f32[256,256], index: 3, kind: input, shape index: {}]
  %s4 = inlined_call_operand.vmem [shape: f32[1,256], index: 4, kind: input, shape index: {}]
  %s5 = inlined_call_operand.hbm [shape: f32[8,256], index: 5, kind: output, shape index: {}]
  %s6 = sld [smem:[#allocation0]]
  $region42: #{tpu_custom_call.1} parent=0
    _
  %s8 = ssub.s32 1, %s6
  %s9 = scalar_select 0, %s8, %s6
  $region1: #{tpu_custom_call.1} parent=0
    #allocation2 [shape = 'u8[4096]{0}', space=vmem, size = 0x1000, scoped, tag = 'input window, operand 0, single buffered']
    #allocation3 [shape = 's32[1]{0}', space=sflag, size = 0x4, scoped, tag = 'scoped memory for tpu_custom_call.1']
    #allocation4 [shape = 's32[1]{0}', space=sflag, size = 0x4, scoped, tag = 'scoped memory for tpu_custom_call.1']
    #allocation5 [shape = 'u8[32768]{0}', space=vmem, size = 0x8000, scoped, tag = 'input window, operand 1, single buffered']
    #allocation6 [shape = 's32[1]{0}', space=sflag, size = 0x4, scoped, tag = 'scoped memory for tpu_custom_call.1']
    #allocation7 [shape = 'u8[262144]{0}', space=vmem, size = 0x40000, scoped, tag = 'input window, operand 3, single buffered']
    #allocation8 [shape = 'u8[8192]{0}', space=vmem, size = 0x2000, scoped, tag = 'output window, operand 0, single buffered']
    %10 = vsyncpa [#allocation3], 0
    %11 = vsyncpa [#allocation6], 0
    %12 = vsyncpa [#allocation4], 0
    // Predicated region
    $region2: #{tpu_custom_call.1} parent=1 // pred_check
      _
    $region3: #{tpu_custom_call.1} parent=1 // pred_check_branch
      %14 = sbr.rel (0) target = $region5
    $region4: #{tpu_custom_call.1} parent=1 // pred_region
      %s16 = ssub.s32 128, 128
      %17 = vsyncadd [#allocation3], %s16
      %s19 = sshll.u32 [#allocation2], 4
      %s20 = int_to_ptr.vmem [resolvable:$true] %s19
      %22 = dma.hbm_to_vmem [thread:$0]  %s0, 128, %s20, [#allocation3]
    $region5: #{tpu_custom_call.1} parent=1 // pred_fallthru
      _
    // Predicated region
    $region6: #{tpu_custom_call.1} parent=1 // pred_check
      _
    $region7: #{tpu_custom_call.1} parent=1 // pred_check_branch
      %24 = sbr.rel (0) target = $region9
    $region8: #{tpu_custom_call.1} parent=1 // pred_region
      %s26 = ssub.s32 1024, 1024
      %27 = vsyncadd [#allocation6], %s26
      %s28 = sshll.u32 [#allocation5], 4
      %s29 = int_to_ptr.vmem [resolvable:$true] %s28
      %34 = dma.hbm_to_vmem [thread:$0]  %s1, 1024, %s29, [#allocation6], 256, 256, 16
    $region9: #{tpu_custom_call.1} parent=1 // pred_fallthru
      _
    // Predicated region
    $region10: #{tpu_custom_call.1} parent=1 // pred_check
      _
    $region11: #{tpu_custom_call.1} parent=1 // pred_check_branch
      %36 = sbr.rel (0) target = $region13
    $region12: #{tpu_custom_call.1} parent=1 // pred_region
      _
    $region13: #{tpu_custom_call.1} parent=1 // pred_fallthru
      _
    // Predicated region
    $region14: #{tpu_custom_call.1} parent=1 // pred_check
      _
    $region15: #{tpu_custom_call.1} parent=1 // pred_check_branch
      %38 = sbr.rel (0) target = $region17
    $region16: #{tpu_custom_call.1} parent=1 // pred_region
      %s40 = ssub.s32 8192, 8192
      %41 = vsyncadd [#allocation6], %s40
      %s42 = sshll.u32 [#allocation7], 4
      %s43 = int_to_ptr.vmem [resolvable:$true] %s42
      %48 = dma.hbm_to_vmem [thread:$0]  %s3, 8192, %s43, [#allocation6], 256, 256, 16
    $region17: #{tpu_custom_call.1} parent=1 // pred_fallthru
      _
    // Predicated region
    $region18: #{tpu_custom_call.1} parent=1 // pred_check
      _
    $region19: #{tpu_custom_call.1} parent=1 // pred_check_branch
      %50 = sbr.rel (0) target = $region21
    $region20: #{tpu_custom_call.1} parent=1 // pred_region
      _
    $region21: #{tpu_custom_call.1} parent=1 // pred_fallthru
      _
    // Predicated region
    $region22: #{tpu_custom_call.1} parent=1 // pred_check
      _
    $region23: #{tpu_custom_call.1} parent=1 // pred_check_branch
      %52 = sbr.rel (0) target = $region25
    $region24: #{tpu_custom_call.1} parent=1 // pred_region
      %53 = dma.done [#allocation3], 128
    $region25: #{tpu_custom_call.1} parent=1 // pred_fallthru
      _
    // Predicated region
    $region26: #{tpu_custom_call.1} parent=1 // pred_check
      _
    $region27: #{tpu_custom_call.1} parent=1 // pred_check_branch
      %55 = sbr.rel (0) target = $region29
    $region28: #{tpu_custom_call.1} parent=1 // pred_region
      %56 = dma.done [#allocation6], 1024
    $region29: #{tpu_custom_call.1} parent=1 // pred_fallthru
      _
    // Predicated region
    $region30: #{tpu_custom_call.1} parent=1 // pred_check
      _
    $region31: #{tpu_custom_call.1} parent=1 // pred_check_branch
      %58 = sbr.rel (0) target = $region33
    $region32: #{tpu_custom_call.1} parent=1 // pred_region
      %59 = dma.done [#allocation6], 8192
    $region33: #{tpu_custom_call.1} parent=1 // pred_fallthru
      _
    %v60 = vld [vmem:[#allocation2] sm:$0xff]
    %v61 = vld [vmem:[#allocation5] sm:$0xff]
    %v62 = vld [vmem:[#allocation5 + $0x8] sm:$0xff]
    %v63 = vld [vmem:[#allocation5 + $0x10] sm:$0xff]
    %v64 = vld [vmem:[#allocation5 + $0x18] sm:$0xff]
    %v65 = vld [vmem:[#allocation5 + $0x20] sm:$0xff]
    %v66 = vld [vmem:[#allocation5 + $0x28] sm:$0xff]
    %v67 = vld [vmem:[#allocation5 + $0x30] sm:$0xff]
    %v68 = vld [vmem:[#allocation5 + $0x38] sm:$0xff]
    %v69 = vld [vmem:[%s2] sm:$0x3]
    %v71 = vlaneseq
    %v72 = vshrl.u32 %v71, 7
    %v73 = vsub.s32 0, %v72
    %v74 = vrot.slane %v69, %v73
    %v75 = vlaneseq
    %v76 = vshrl.u32 %v75, 7
    %v77 = vsub.s32 1, %v76
    %v78 = vrot.slane %v69, %v77
    %vm81 = vcmask 261120
    %v83 = vsel %vm81, %v60, 0
    %85 = vmatprep.subr.mxu0 0.0
    %86 = vmatpush1.msra.mxu0 0.0
    %87 = vmatprep.subr.mxu0 0.0
    %88 = vmatpush1.msra.mxu0 0.0
    %89 = vmatprep.subr.mxu0 0.0
    %90 = vmatpush1.msra.mxu0 0.0
    %91 = vmatprep.subr.mxu0 0.0
    %92 = vmatpush1.msra.mxu0 0.0
    %93 = vmatprep.subr.mxu0 0.0
    %94 = vmatpush1.msra.mxu0 0.0
    %95 = vmatprep.subr.mxu0 0.0
    %96 = vmatpush1.msra.mxu0 0.0
    %97 = vmatprep.subr.mxu0 0.0
    %98 = vmatpush1.msra.mxu0 0.0
    %99 = vmatprep.subr.mxu0 0.0
    %100 = vmatpush1.msra.mxu0 0.0
    %101 = vmatprep.subr.mxu0 0.0
    %102 = vmatpush1.msra.mxu0 0.0
    %103 = vmatprep.subr.mxu0 0.0
    %104 = vmatpush1.msra.mxu0 0.0
    %105 = vmatprep.subr.mxu0 0.0
    %106 = vmatpush1.msra.mxu0 0.0
    %107 = vmatprep.subr.mxu0 0.0
    %108 = vmatpush1.msra.mxu0 0.0
    %109 = vmatprep.subr.mxu0 %v68
    %110 = vmatpush1.msra.mxu0 %v67
    %111 = vmatprep.subr.mxu0 %v66
    %112 = vmatpush1.msra.mxu0 %v65
    %113 = vmatprep.subr.mxu0 %v64
    %114 = vmatpush1.msra.mxu0 %v63
    %115 = vmatprep.subr.mxu0 %v62
    %116 = vmatpush1.msra.mxu0 %v61
    %117 = vmatprep.subr.mxu0 0.0
    %118 = vmatpush2.msra.mxu0 0.0
    %119 = vmatprep.subr.mxu0 0.0
    %120 = vmatpush2.msra.mxu0 0.0
    %121 = vmatprep.subr.mxu0 0.0
    %122 = vmatpush2.msra.mxu0 0.0
    %123 = vmatprep.subr.mxu0 0.0
    %124 = vmatpush2.msra.mxu0 0.0
    %125 = vmatprep.subr.mxu0 0.0
    %126 = vmatpush2.msra.mxu0 0.0
    %127 = vmatprep.subr.mxu0 0.0
    %128 = vmatpush2.msra.mxu0 0.0
    %129 = vmatprep.subr.mxu0 0.0
    %130 = vmatpush2.msra.mxu0 0.0
    %131 = vmatprep.subr.mxu0 0.0
    %132 = vmatpush2.msra.mxu0 0.0
    %133 = vmatprep.subr.mxu0 0.0
    %134 = vmatpush2.msra.mxu0 0.0
    %135 = vmatprep.subr.mxu0 0.0
    %136 = vmatpush2.msra.mxu0 0.0
    %137 = vmatprep.subr.mxu0 0.0
    %138 = vmatpush2.msra.mxu0 0.0
    %139 = vmatprep.subr.mxu0 0.0
    %140 = vmatpush2.msra.mxu0 0.0
    %141 = vmatprep.subr.mxu0 0.0
    %142 = vmatpush2.msra.mxu0 0.0
    %143 = vmatprep.subr.mxu0 0.0
    %144 = vmatpush2.msra.mxu0 0.0
    %145 = vmatprep.subr.mxu0 0.0
    %146 = vmatpush2.msra.mxu0 0.0
    %147 = vmatprep.subr.mxu0 0.0
    %148 = vmatpush2.msra.mxu0 0.0
    %149 = vmatprep.mubr.f32.mxu0 0.0
    %150 = vmatmul.mubr.f32.gmra.mxu0 %v83
    %v151 = vpop.f32.mrf.mxu0
    %v152 = vadd.f32 %v74, %v151
    %v153 = vpop.f32.mrf.mxu0
    %v154 = vadd.f32 %v78, %v153
    %155 = vdwg.mxu0
    %v156 = vmax.f32 %v152, 0.0
    %v157 = vmax.f32 %v154, 0.0
    %v158 = vld [vmem:[#allocation7] sm:$0xff]
    %v159 = vld [vmem:[#allocation7 + $0x8] sm:$0xff]
    %v160 = vld [vmem:[#allocation7 + $0x10] sm:$0xff]
    %v161 = vld [vmem:[#allocation7 + $0x18] sm:$0xff]
    %v162 = vld [vmem:[#allocation7 + $0x20] sm:$0xff]
    %v163 = vld [vmem:[#allocation7 + $0x28] sm:$0xff]
    %v164 = vld [vmem:[#allocation7 + $0x30] sm:$0xff]
    %v165 = vld [vmem:[#allocation7 + $0x38] sm:$0xff]
    %v166 = vld [vmem:[#allocation7 + $0x40] sm:$0xff]
    %v167 = vld [vmem:[#allocation7 + $0x48] sm:$0xff]
    %v168 = vld [vmem:[#allocation7 + $0x50] sm:$0xff]
    %v169 = vld [vmem:[#allocation7 + $0x58] sm:$0xff]
    %v170 = vld [vmem:[#allocation7 + $0x60] sm:$0xff]
    %v171 = vld [vmem:[#allocation7 + $0x68] sm:$0xff]
    %v172 = vld [vmem:[#allocation7 + $0x70] sm:$0xff]
    %v173 = vld [vmem:[#allocation7 + $0x78] sm:$0xff]
    %v174 = vld [vmem:[#allocation7 + $0x80] sm:$0xff]
    %v175 = vld [vmem:[#allocation7 + $0x88] sm:$0xff]
    %v176 = vld [vmem:[#allocation7 + $0x90] sm:$0xff]
    %v177 = vld [vmem:[#allocation7 + $0x98] sm:$0xff]
    %v178 = vld [vmem:[#allocation7 + $0xa0] sm:$0xff]
    %v179 = vld [vmem:[#allocation7 + $0xa8] sm:$0xff]
    %v180 = vld [vmem:[#allocation7 + $0xb0] sm:$0xff]
    %v181 = vld [vmem:[#allocation7 + $0xb8] sm:$0xff]
    %v182 = vld [vmem:[#allocation7 + $0xc0] sm:$0xff]
    %v183 = vld [vmem:[#allocation7 + $0xc8] sm:$0xff]
    %v184 = vld [vmem:[#allocation7 + $0xd0] sm:$0xff]
    %v185 = vld [vmem:[#allocation7 + $0xd8] sm:$0xff]
    %v186 = vld [vmem:[#allocation7 + $0xe0] sm:$0xff]
    %v187 = vld [vmem:[#allocation7 + $0xe8] sm:$0xff]
    %v188 = vld [vmem:[#allocation7 + $0xf0] sm:$0xff]
    %v189 = vld [vmem:[#allocation7 + $0xf8] sm:$0xff]
    %v190 = vld [vmem:[#allocation7 + $0x100] sm:$0xff]
    %v191 = vld [vmem:[#allocation7 + $0x108] sm:$0xff]
    %v192 = vld [vmem:[#allocation7 + $0x110] sm:$0xff]
    %v193 = vld [vmem:[#allocation7 + $0x118] sm:$0xff]
    %v194 = vld [vmem:[#allocation7 + $0x120] sm:$0xff]
    %v195 = vld [vmem:[#allocation7 + $0x128] sm:$0xff]
    %v196 = vld [vmem:[#allocation7 + $0x130] sm:$0xff]
    %v197 = vld [vmem:[#allocation7 + $0x138] sm:$0xff]
    %v198 = vld [vmem:[#allocation7 + $0x140] sm:$0xff]
    %v199 = vld [vmem:[#allocation7 + $0x148] sm:$0xff]
    %v200 = vld [vmem:[#allocation7 + $0x150] sm:$0xff]
    %v201 = vld [vmem:[#allocation7 + $0x158] sm:$0xff]
    %v202 = vld [vmem:[#allocation7 + $0x160] sm:$0xff]
    %v203 = vld [vmem:[#allocation7 + $0x168] sm:$0xff]
    %v204 = vld [vmem:[#allocation7 + $0x170] sm:$0xff]
    %v205 = vld [vmem:[#allocation7 + $0x178] sm:$0xff]
    %v206 = vld [vmem:[#allocation7 + $0x180] sm:$0xff]
    %v207 = vld [vmem:[#allocation7 + $0x188] sm:$0xff]
    %v208 = vld [vmem:[#allocation7 + $0x190] sm:$0xff]
    %v209 = vld [vmem:[#allocation7 + $0x198] sm:$0xff]
    %v210 = vld [vmem:[#allocation7 + $0x1a0] sm:$0xff]
    %v211 = vld [vmem:[#allocation7 + $0x1a8] sm:$0xff]
    %v212 = vld [vmem:[#allocation7 + $0x1b0] sm:$0xff]
    %v213 = vld [vmem:[#allocation7 + $0x1b8] sm:$0xff]
    %v214 = vld [vmem:[#allocation7 + $0x1c0] sm:$0xff]
    %v215 = vld [vmem:[#allocation7 + $0x1c8] sm:$0xff]
    %v216 = vld [vmem:[#allocation7 + $0x1d0] sm:$0xff]
    %v217 = vld [vmem:[#allocation7 + $0x1d8] sm:$0xff]
    %v218 = vld [vmem:[#allocation7 + $0x1e0] sm:$0xff]
    %v219 = vld [vmem:[#allocation7 + $0x1e8] sm:$0xff]
    %v220 = vld [vmem:[#allocation7 + $0x1f0] sm:$0xff]
    %v221 = vld [vmem:[#allocation7 + $0x1f8] sm:$0xff]
    %v222 = vld [vmem:[%s4] sm:$0x3]
    %v224 = vlaneseq
    %v225 = vshrl.u32 %v224, 7
    %v226 = vsub.s32 0, %v225
    %v227 = vrot.slane %v222, %v226
    %v228 = vlaneseq
    %v229 = vshrl.u32 %v228, 7
    %v230 = vsub.s32 1, %v229
    %v231 = vrot.slane %v222, %v230
    %234 = vmatprep.subr.mxu0 %v189
    %235 = vmatpush1.msra.mxu0 %v188
    %236 = vmatprep.subr.mxu0 %v187
    %237 = vmatpush1.msra.mxu0 %v186
    %238 = vmatprep.subr.mxu0 %v185
    %239 = vmatpush1.msra.mxu0 %v184
    %240 = vmatprep.subr.mxu0 %v183
    %241 = vmatpush1.msra.mxu0 %v182
    %242 = vmatprep.subr.mxu0 %v181
    %243 = vmatpush1.msra.mxu0 %v180
    %244 = vmatprep.subr.mxu0 %v179
    %245 = vmatpush1.msra.mxu0 %v178
    %246 = vmatprep.subr.mxu0 %v177
    %247 = vmatpush1.msra.mxu0 %v176
    %248 = vmatprep.subr.mxu0 %v175
    %249 = vmatpush1.msra.mxu0 %v174
    %250 = vmatprep.subr.mxu0 %v173
    %251 = vmatpush1.msra.mxu0 %v172
    %252 = vmatprep.subr.mxu0 %v171
    %253 = vmatpush1.msra.mxu0 %v170
    %254 = vmatprep.subr.mxu0 %v169
    %255 = vmatpush1.msra.mxu0 %v168
    %256 = vmatprep.subr.mxu0 %v167
    %257 = vmatpush1.msra.mxu0 %v166
    %258 = vmatprep.subr.mxu0 %v165
    %259 = vmatpush1.msra.mxu0 %v164
    %260 = vmatprep.subr.mxu0 %v163
    %261 = vmatpush1.msra.mxu0 %v162
    %262 = vmatprep.subr.mxu0 %v161
    %263 = vmatpush1.msra.mxu0 %v160
    %264 = vmatprep.subr.mxu0 %v159
    %265 = vmatpush1.msra.mxu0 %v158
    %266 = vmatprep.subr.mxu0 %v221
    %267 = vmatpush2.msra.mxu0 %v220
    %268 = vmatprep.subr.mxu0 %v219
    %269 = vmatpush2.msra.mxu0 %v218
    %270 = vmatprep.subr.mxu0 %v217
    %271 = vmatpush2.msra.mxu0 %v216
    %272 = vmatprep.subr.mxu0 %v215
    %273 = vmatpush2.msra.mxu0 %v214
    %274 = vmatprep.subr.mxu0 %v213
    %275 = vmatpush2.msra.mxu0 %v212
    %276 = vmatprep.subr.mxu0 %v211
    %277 = vmatpush2.msra.mxu0 %v210
    %278 = vmatprep.subr.mxu0 %v209
    %279 = vmatpush2.msra.mxu0 %v208
    %280 = vmatprep.subr.mxu0 %v207
    %281 = vmatpush2.msra.mxu0 %v206
    %282 = vmatprep.subr.mxu0 %v205
    %283 = vmatpush2.msra.mxu0 %v204
    %284 = vmatprep.subr.mxu0 %v203
    %285 = vmatpush2.msra.mxu0 %v202
    %286 = vmatprep.subr.mxu0 %v201
    %287 = vmatpush2.msra.mxu0 %v200
    %288 = vmatprep.subr.mxu0 %v199
    %289 = vmatpush2.msra.mxu0 %v198
    %290 = vmatprep.subr.mxu0 %v197
    %291 = vmatpush2.msra.mxu0 %v196
    %292 = vmatprep.subr.mxu0 %v195
    %293 = vmatpush2.msra.mxu0 %v194
    %294 = vmatprep.subr.mxu0 %v193
    %295 = vmatpush2.msra.mxu0 %v192
    %296 = vmatprep.subr.mxu0 %v191
    %297 = vmatpush2.msra.mxu0 %v190
    %298 = vmatprep.mubr.f32.mxu0 %v157
    %299 = vmatmul.mubr.f32.gmra.mxu0 %v156
    %v300 = vpop.f32.mrf.mxu0
    %v301 = vadd.f32 %v227, %v300
    %v302 = vpop.f32.mrf.mxu0
    %v303 = vadd.f32 %v231, %v302
    %304 = vdwg.mxu0
    %305 = vst [vmem:[#allocation8] sm:$0xff] %v301
    %306 = vst [vmem:[#allocation8 + $0x8] sm:$0xff] %v303
    // Predicated region
    $region34: #{tpu_custom_call.1} parent=1 // pred_check
      _
    $region35: #{tpu_custom_call.1} parent=1 // pred_check_branch
      %308 = sbr.rel (0) target = $region37
    $region36: #{tpu_custom_call.1} parent=1 // pred_region
      %s310 = ssub.s32 256, 256
      %311 = vsyncadd [#allocation4], %s310
      %s313 = sshll.u32 [#allocation8], 4
      %s314 = int_to_ptr.vmem [resolvable:$true] %s313
      %316 = dma.vmem_to_hbm [thread:$0]  %s314, 256, %s5, [#allocation4]
    $region37: #{tpu_custom_call.1} parent=1 // pred_fallthru
      _
    // Predicated region
    $region38: #{tpu_custom_call.1} parent=1 // pred_check
      _
    $region39: #{tpu_custom_call.1} parent=1 // pred_check_branch
      %318 = sbr.rel (0) target = $region41
    $region40: #{tpu_custom_call.1} parent=1 // pred_region
      %319 = dma.done [#allocation4], 256
    $region41: #{tpu_custom_call.1} parent=1 // pred_fallthru
      _
    %320 = vsyncpa [#allocation3], 1
    %321 = vsyncpa [#allocation6], 1
    %322 = vsyncpa [#allocation4], 1

</llo_original>
